<compile_context>
chip_gen: v5e
topology: v5e:2x2
jax: 0.10.0
libtpu: 0.0.40
codegen_flags: <defaults>
</compile_context>

<pallas_src>
import functools

import jax
import jax.numpy as jnp
from jax.experimental import pallas as pl
from jax.experimental.pallas import tpu as pltpu


def _round_up(x, m):
    return (x + m - 1) // m * m


def linear_block_kernel(x_ref, w_ref, b_ref, o_ref):
    # x_ref: (bn, ni)    compute dtype (bf16) batch tile
    # w_ref: (ni, nf_p)  compute dtype, BN scale folded in, pre-transposed
    # b_ref: (1, nf_p)   f32, BN shift folded in
    # o_ref: (bn, nf_p)
    y = jnp.dot(x_ref[...], w_ref[...], preferred_element_type=jnp.float32)
    o_ref[...] = (y + b_ref[...]).astype(o_ref.dtype)


@functools.partial(jax.jit, static_argnames=("block_n", "compute_dtype"))
def linear_block(x, gamma, beta, running_mean, running_var, weight, bias,
                 eps=1e-5, block_n=256, compute_dtype=jnp.bfloat16):
    """LinearBlock forward (inference).

    x:      (N, ni)
    gamma, beta, running_mean, running_var: (ni,)   BatchNorm1d params (eval)
    weight: (nf, ni)   (PyTorch nn.Linear layout)
    bias:   (nf,)
    returns (N, nf) in x.dtype
    """
    N, ni = x.shape
    nf = weight.shape[0]
    out_dtype = x.dtype

    # --- Fold BatchNorm1d (eval mode) into the linear layer (plain JAX glue) ---
    #   (x * scale + shift) @ W^T + b  ==  x @ (W * scale)^T + (b + shift @ W^T)
    scale = (gamma / jnp.sqrt(running_var + eps)).astype(jnp.float32)        # (ni,)
    shift = (beta - running_mean * scale).astype(jnp.float32)                # (ni,)
    w32 = weight.astype(jnp.float32)
    w_folded = (w32 * scale[None, :]).T                                      # (ni, nf)
    b_folded = bias.astype(jnp.float32) + shift @ w32.T                      # (nf,)
    # TODO(synk): training-mode dropout (random mask + 1/(1-p) scaling) and
    # batch-statistics BatchNorm omitted; both are identity / folded at inference.

    # --- Padding: 16-row alignment for bf16 sublanes, lane-dense (x128) output ---
    row_align = 16 if compute_dtype == jnp.bfloat16 else 8
    bn = max(row_align, min(_round_up(block_n, row_align), _round_up(N, row_align)))
    n_pad = _round_up(N, bn)
    nf_p = _round_up(nf, 128)

    x_c = x.astype(compute_dtype)
    if n_pad != N:
        x_c = jnp.pad(x_c, ((0, n_pad - N), (0, 0)))
    w_c = w_folded.astype(compute_dtype)
    if nf_p != nf:
        w_c = jnp.pad(w_c, ((0, 0), (0, nf_p - nf)))
        b_folded = jnp.pad(b_folded, (0, nf_p - nf))
    b_c = b_folded.reshape(1, nf_p)

    grid = (n_pad // bn,)
    flops = 2 * n_pad * ni * nf_p
    bytes_accessed = (x_c.size * x_c.dtype.itemsize
                      + w_c.size * w_c.dtype.itemsize
                      + b_c.size * 4
                      + n_pad * nf_p * jnp.dtype(out_dtype).itemsize)

    out = pl.pallas_call(
        linear_block_kernel,
        out_shape=jax.ShapeDtypeStruct((n_pad, nf_p), out_dtype),
        grid_spec=pltpu.PrefetchScalarGridSpec(
            num_scalar_prefetch=0,
            grid=grid,
            in_specs=[
                pl.BlockSpec((bn, ni), lambda i: (i, 0)),            # x tile
                pl.BlockSpec((ni, nf_p), lambda i: (0, 0),           # folded W^T
                             pipeline_mode=pl.Buffered(1)),
                pl.BlockSpec((1, nf_p), lambda i: (0, 0),            # folded bias
                             pipeline_mode=pl.Buffered(1)),
            ],
            out_specs=pl.BlockSpec((bn, nf_p), lambda i: (i, 0)),
        ),
        compiler_params=pltpu.CompilerParams(
            dimension_semantics=("parallel",),
            vmem_limit_bytes=64 * 1024 * 1024),
        cost_estimate=pl.CostEstimate(flops=flops, transcendentals=0,
                                      bytes_accessed=bytes_accessed),
    )(x_c, w_c, b_c)

    return out[:N, :nf]


def linear_block_ref(x, gamma, beta, running_mean, running_var, weight, bias,
                     eps=1e-5):
    xn = (x - running_mean) / jnp.sqrt(running_var + eps) * gamma + beta
    return xn @ weight.T + bias


if __name__ == "__main__":
    # Shapes consistent with LinearBlock; N deliberately not a multiple of the
    # tile and nf not a multiple of 128 to exercise the padding paths.
    N, ni, nf = 500, 256, 80
    key = jax.random.PRNGKey(0)
    kx, kw, kb, kg, kbe, km, kv = jax.random.split(key, 7)

    x = jax.random.normal(kx, (N, ni), dtype=jnp.float32)

    # Deterministic synthetic parameters (same shapes as the PyTorch module).
    weight = jax.random.normal(kw, (nf, ni), dtype=jnp.float32) * 0.1     # lin.weight
    bias = jax.random.normal(kb, (nf,), dtype=jnp.float32) * 0.1          # lin.bias
    gamma = 1.0 + 0.1 * jax.random.normal(kg, (ni,), dtype=jnp.float32)   # bn.weight
    beta = 0.1 * jax.random.normal(kbe, (ni,), dtype=jnp.float32)         # bn.bias
    running_mean = 0.1 * jax.random.normal(km, (ni,), dtype=jnp.float32)
    running_var = 1.0 + 0.1 * jax.random.uniform(kv, (ni,), dtype=jnp.float32)

    out = linear_block(x, gamma, beta, running_mean, running_var, weight, bias)
    out = jax.block_until_ready(out)
    assert out.shape == (N, nf)

    # (a) Tight check against the same folded-bf16 math done in plain JAX
    #     (isolates kernel correctness from bf16 quantization of inputs).
    eps = 1e-5
    scale = gamma / jnp.sqrt(running_var + eps)
    shift = beta - running_mean * scale
    w_f = ((weight * scale[None, :]).T).astype(jnp.bfloat16).astype(jnp.float32)
    x_f = x.astype(jnp.bfloat16).astype(jnp.float32)
    ref_bf16 = (jnp.dot(x_f, w_f, precision=jax.lax.Precision.HIGHEST)
                + (bias + shift @ weight.T))
    assert jnp.allclose(out, ref_bf16, atol=2e-3, rtol=2e-3), "kernel math mismatch"

    # (b) Sanity check against exact f32 module semantics (bf16-bounded error).
    ref_f32 = linear_block_ref(x, gamma, beta, running_mean, running_var,
                               weight, bias, eps)
    assert jnp.allclose(out, ref_f32, atol=2e-1, rtol=5e-2), "mismatch vs f32 reference"

    print("KERNEL_OK")
</pallas_src>

<mosaic_0001>
module attributes {stable_mosaic.version = 11 : i64} {
  func.func @linear_block_kernel(%arg0: i32, %arg1: memref<256x256xbf16, #tpu.memory_space<vmem>>, %arg2: memref<256x128xbf16, #tpu.memory_space<vmem>>, %arg3: memref<1x128xf32, #tpu.memory_space<vmem>>, %arg4: memref<256x128xf32, #tpu.memory_space<vmem>>) attributes {dimension_semantics = [#tpu.dimension_semantics<parallel>], iteration_bounds = array<i64: 2>, scalar_prefetch = 0 : i64, scratch_operands = 0 : i64, tpu.core_type = #tpu.core_type<tc>, window_params = [{transform_indices = @transform_0, window_bounds = array<i64: 256, 256>}, {pipeline_mode = #tpu.pipeline_mode<synchronous>, transform_indices = @transform_1, window_bounds = array<i64: 256, 128>}, {pipeline_mode = #tpu.pipeline_mode<synchronous>, transform_indices = @transform_2, window_bounds = array<i64: 1, 128>}, {transform_indices = @transform_3, window_bounds = array<i64: 256, 128>}]} {
    %c0 = arith.constant 0 : index
    %c0_0 = arith.constant 0 : index
    %0 = vector.load %arg1[%c0, %c0_0] : memref<256x256xbf16, #tpu.memory_space<vmem>>, vector<256x256xbf16>
    %c0_1 = arith.constant 0 : index
    %c0_2 = arith.constant 0 : index
    %1 = vector.load %arg2[%c0_1, %c0_2] : memref<256x128xbf16, #tpu.memory_space<vmem>>, vector<256x128xbf16>
    %cst = arith.constant dense<0.000000e+00> : vector<256x128xf32>
    %2 = tpu.matmul %0, %1, %cst {dimension_numbers = #tpu.dot_dimension_numbers<[1], [0], [0], [1], [0, 0, 1, 1], [], []>} : vector<256x256xbf16>, vector<256x128xbf16>, vector<256x128xf32> -> vector<256x128xf32>
    %c0_3 = arith.constant 0 : index
    %c0_4 = arith.constant 0 : index
    %3 = vector.load %arg3[%c0_3, %c0_4] : memref<1x128xf32, #tpu.memory_space<vmem>>, vector<1x128xf32>
    %4 = vector.broadcast %3 : vector<1x128xf32> to vector<256x128xf32>
    %5 = arith.addf %2, %4 : vector<256x128xf32>
    %c0_5 = arith.constant 0 : index
    %c0_6 = arith.constant 0 : index
    %6 = vector.load %arg4[%c0_5, %c0_6] : memref<256x128xf32, #tpu.memory_space<vmem>>, vector<256x128xf32>
    tpu.vector_store %arg4[%c0_5, %c0_6], %5 {strides = array<i32>} : memref<256x128xf32, #tpu.memory_space<vmem>>, vector<256x128xf32>,
    return
  }
  func.func @transform_0(%arg0: i32) -> (i32, i32) {
    %c0_i32 = arith.constant 0 : i32
    %c0_i32_0 = arith.constant 0 : i32
    return %arg0, %c0_i32 : i32, i32
  }
  func.func @transform_1(%arg0: i32) -> (i32, i32) {
    %c0_i32 = arith.constant 0 : i32
    %c0_i32_0 = arith.constant 0 : i32
    %c0_i32_1 = arith.constant 0 : i32
    return %c0_i32, %c0_i32_0 : i32, i32
  }
  func.func @transform_2(%arg0: i32) -> (i32, i32) {
    %c0_i32 = arith.constant 0 : i32
    %c0_i32_0 = arith.constant 0 : i32
    %c0_i32_1 = arith.constant 0 : i32
    return %c0_i32, %c0_i32_0 : i32, i32
  }
  func.func @transform_3(%arg0: i32) -> (i32, i32) {
    %c0_i32 = arith.constant 0 : i32
    %c0_i32_0 = arith.constant 0 : i32
    return %arg0, %c0_i32 : i32, i32
  }
}

</mosaic_0001>

<llo_original>
// kernel: linear_block.1
$region0: #{linear_block.1}
  #allocation0 [shape = 'u32[]', space=smem, size = 0x4, offset = 0x4, fixed_abs, tag = 'smem constant byte address 0x4 - core index']
  #allocation1 [shape = 'u32[72,128]{1,0:T(1,128)}', space=vmem, size = 0x9000, scoped, tag = 'internal scratch']
  %s0 = inlined_call_operand.vmem [shape: bf16[512,256], index: 0, kind: input, shape index: {}]
  %s1 = inlined_call_operand.vmem [shape: bf16[256,128], index: 1, kind: input, shape index: {}]
  %s2 = inlined_call_operand.vmem [shape: f32[1,128], index: 2, kind: input, shape index: {}]
  %s3 = inlined_call_operand.vmem [shape: f32[512,128], index: 3, kind: output, shape index: {}]
  %s4 = sld [smem:[#allocation0]]
  $region45: #{linear_block.1} parent=0
    _
  %s6 = ssub.s32 1, %s4
  %s7 = scalar_select 0, %s6, %s4
  loop: start=0, step=1, limit=4
  $region2: #{linear_block.1} parent=0 // loop_pre_header
    _
  $region3: #{linear_block.1} parent=0 // loop_header
    %s9 = sphi 0, %s13
    %p10 = scmp.ge.s32.totalorder %s9, 4
    %s19 = sphi 0, %s21
    %s22 = sphi 0, %s19
    %s23 = sphi 0, %s22
    %s39 = sphi 0, %s23
    %s43 = sphi 0, %s43
    %s45 = sphi 0, %s43
    %s46 = sphi 0, %s45
    %s60 = sphi 0, %s46
    %s64 = sphi 0, %s64
    %s66 = sphi 0, %s64
    %s67 = sphi 0, %s66
    %s81 = sphi 0, %s67
    %s87 = sphi 0, %s89
    %s90 = sphi 0, %s87
    %s91 = sphi 0, %s90
    %s107 = sphi 0, %s91
  $region4: #{linear_block.1} parent=0 // loop_header_branch
    %12 = sbr.rel (%p10) target = $region8
  $region5: #{linear_block.1} parent=0 // loop_body
    %s14 = ssub.s32 %s9, 1
    %s15 = ssub.s32 %s9, 2
    %s16 = sadd.s32 %s9, 1
    %s17 = ssub.s32 %s9, %s16
    %p18 = scmp.eq.s32.totalorder %s17, 0
    %s20 = sadd.s32 %s19, 1
    %s21 = scalar_select %p18, %s19, %s20
    %p24 = pneg %p18
    %p25 = scmp.eq.s32.totalorder %s9, 1
    %p26 = por %p24, %p25
    %p27 = scmp.ne.s32.totalorder %s19, %s22
    %p28 = scmp.eq.s32.totalorder %s9, 0
    %p29 = por %p27, %p28
    %p30 = scmp.ne.s32.totalorder %s19, %s22
    %p31 = scmp.eq.s32.totalorder %s14, 1
    %p32 = por %p30, %p31
    %p33 = scmp.ne.s32.totalorder %s22, %s23
    %p34 = scmp.eq.s32.totalorder %s14, 0
    %p35 = por %p33, %p34
    %p36 = scmp.ne.s32.totalorder %s22, %s23
    %p37 = scmp.eq.s32.totalorder %s15, 1
    %p38 = por %p36, %p37
    %p40 = scmp.ne.s32.totalorder %s23, %s39
    %p41 = scmp.eq.s32.totalorder %s15, 0
    %p42 = por %p40, %p41
    %s44 = sadd.s32 %s43, 1
    %p47 = scmp.eq.s32.totalorder %s9, 1
    %p48 = scmp.ne.s32.totalorder %s43, %s45
    %p49 = scmp.eq.s32.totalorder %s9, 0
    %p50 = por %p48, %p49
    %p51 = scmp.ne.s32.totalorder %s43, %s45
    %p52 = scmp.eq.s32.totalorder %s14, 1
    %p53 = por %p51, %p52
    %p54 = scmp.ne.s32.totalorder %s45, %s46
    %p55 = scmp.eq.s32.totalorder %s14, 0
    %p56 = por %p54, %p55
    %p57 = scmp.ne.s32.totalorder %s45, %s46
    %p58 = scmp.eq.s32.totalorder %s15, 1
    %p59 = por %p57, %p58
    %p61 = scmp.ne.s32.totalorder %s46, %s60
    %p62 = scmp.eq.s32.totalorder %s15, 0
    %p63 = por %p61, %p62
    %s65 = sadd.s32 %s64, 1
    %p68 = scmp.eq.s32.totalorder %s9, 1
    %p69 = scmp.ne.s32.totalorder %s64, %s66
    %p70 = scmp.eq.s32.totalorder %s9, 0
    %p71 = por %p69, %p70
    %p72 = scmp.ne.s32.totalorder %s64, %s66
    %p73 = scmp.eq.s32.totalorder %s14, 1
    %p74 = por %p72, %p73
    %p75 = scmp.ne.s32.totalorder %s66, %s67
    %p76 = scmp.eq.s32.totalorder %s14, 0
    %p77 = por %p75, %p76
    %p78 = scmp.ne.s32.totalorder %s66, %s67
    %p79 = scmp.eq.s32.totalorder %s15, 1
    %p80 = por %p78, %p79
    %p82 = scmp.ne.s32.totalorder %s67, %s81
    %p83 = scmp.eq.s32.totalorder %s15, 0
    %p84 = por %p82, %p83
    %s85 = ssub.s32 %s9, %s16
    %p86 = scmp.eq.s32.totalorder %s85, 0
    %s88 = sadd.s32 %s87, 1
    %s89 = scalar_select %p86, %s87, %s88
    %p92 = pneg %p86
    %p93 = scmp.eq.s32.totalorder %s9, 1
    %p94 = por %p92, %p93
    %p95 = scmp.ne.s32.totalorder %s87, %s90
    %p96 = scmp.eq.s32.totalorder %s9, 0
    %p97 = por %p95, %p96
    %p98 = scmp.ne.s32.totalorder %s87, %s90
    %p99 = scmp.eq.s32.totalorder %s14, 1
    %p100 = por %p98, %p99
    %p101 = scmp.ne.s32.totalorder %s90, %s91
    %p102 = scmp.eq.s32.totalorder %s14, 0
    %p103 = por %p101, %p102
    %p104 = scmp.ne.s32.totalorder %s90, %s91
    %p105 = scmp.eq.s32.totalorder %s15, 1
    %p106 = por %p104, %p105
    %p108 = scmp.ne.s32.totalorder %s91, %s107
    %p109 = scmp.eq.s32.totalorder %s15, 0
    %p110 = por %p108, %p109
    %p111 = scmp.le.s32.totalorder 1, %s9
    %p112 = scmp.lt.s32.totalorder %s9, 3
    %p113 = pnand %p111, %p112
    %p114 = pneg %p113
    // Predicated region
    $region9: #{linear_block.1} parent=5 // pred_check
      _
    $region10: #{linear_block.1} parent=5 // pred_check_branch
      %116 = sbr.rel (%p113) target = $region12
    $region11: #{linear_block.1} parent=5 // pred_region
      %s117 = ssub.s32 %s9, 1
      // Predicated region
      $region13: #{linear_block.1} parent=11 // pred_check
        %p118 = pneg %p56
      $region14: #{linear_block.1} parent=11 // pred_check_branch
        %120 = sbr.rel (%p118) target = $region16
      $region15: #{linear_block.1} parent=11 // pred_region
        _
      $region16: #{linear_block.1} parent=11 // pred_fallthru
        _
      // Predicated region
      $region17: #{linear_block.1} parent=11 // pred_check
        %p121 = pneg %p77
      $region18: #{linear_block.1} parent=11 // pred_check_branch
        %123 = sbr.rel (%p121) target = $region20
      $region19: #{linear_block.1} parent=11 // pred_region
        _
      $region20: #{linear_block.1} parent=11 // pred_fallthru
        _
    $region12: #{linear_block.1} parent=5 // pred_fallthru
      _
    %p124 = scmp.lt.s32.totalorder %s9, 2
    // Predicated region
    $region21: #{linear_block.1} parent=5 // pred_check
      %p125 = pneg %p124
    $region22: #{linear_block.1} parent=5 // pred_check_branch
      %127 = sbr.rel (%p125) target = $region24
    $region23: #{linear_block.1} parent=5 // pred_region
      // Predicated region
      $region25: #{linear_block.1} parent=23 // pred_check
        %p128 = pneg %p29
      $region26: #{linear_block.1} parent=23 // pred_check_branch
        %130 = sbr.rel (%p128) target = $region28
      $region27: #{linear_block.1} parent=23 // pred_region
        %s131 = smul.u32 32, %s9
        %p132 = scmp.lt.s32.totalorder %s131, 63
        %s133 = scalar_select %p132, %s131, 63
        %s134 = smul.addr %s133, 2
        %s135 = smul.addr %s134, 4
        %s136 = scalar_lea.vmem %s0, %s135
        %s137 = smul.u32 32, %s9
      $region28: #{linear_block.1} parent=23 // pred_fallthru
        _
    $region24: #{linear_block.1} parent=5 // pred_fallthru
      _
    %p138 = scmp.le.s32.totalorder 1, %s9
    %p139 = scmp.lt.s32.totalorder %s9, 3
    %p140 = pnand %p138, %p139
    %p141 = pneg %p140
    // Predicated region
    $region29: #{linear_block.1} parent=5 // pred_check
      _
    $region30: #{linear_block.1} parent=5 // pred_check_branch
      %143 = sbr.rel (%p140) target = $region32
    $region31: #{linear_block.1} parent=5 // pred_region
      %s144 = ssub.s32 %s9, 1
      %s145 = smul.u32 32, %s14
      %p146 = scmp.lt.s32.totalorder %s145, 63
      %s147 = scalar_select %p146, %s145, 63
      %s148 = smul.addr %s147, 2
      %s149 = smul.addr %s148, 4
      %s150 = scalar_lea.vmem %s0, %s149
      %p151 = pneg %p35
      %p152 = pneg %p32
      %p153 = pneg %p56
      %p154 = pneg %p53
      %p155 = pneg %p77
      %p156 = pneg %p74
      %p157 = pneg %p103
      %p158 = pneg %p100
      %s159 = smul.u32 32, %s14
      %p160 = scmp.lt.s32.totalorder %s159, 63
      %s161 = scalar_select %p160, %s159, 63
      %s162 = smul.addr %s161, 8
      %s163 = scalar_lea.vmem %s3, %s162
      %s164 = smul.u32 32, %s14
      %p165 = scmp.lt.s32.totalorder %s164, 63
      %s166 = scalar_select %p165, %s164, 63
      %s167 = smul.addr %s166, 2
      %s168 = smul.addr %s167, 4
      %s169 = scalar_lea.vmem %s0, %s168
      %s170 = smul.u32 32, %s14
      %s171 = smul.u32 32, %s14
      %p172 = scmp.lt.s32.totalorder %s171, 63
      %s173 = scalar_select %p172, %s171, 63
      %s174 = smul.addr %s173, 8
      %s175 = scalar_lea.vmem %s3, %s174
      %s176 = smul.u32 32, %s14
      %v177 = vld [vmem:[%s169] sm:$0xff]
      %v178 = vld [vmem:[%s169 + $0x8] sm:$0xff]
      %v179 = vld [vmem:[%s169 + $0x10] sm:$0xff]
      %v180 = vld [vmem:[%s169 + $0x18] sm:$0xff]
      %v181 = vld [vmem:[%s169 + $0x20] sm:$0xff]
      %v182 = vld [vmem:[%s169 + $0x28] sm:$0xff]
      %v183 = vld [vmem:[%s169 + $0x30] sm:$0xff]
      %v184 = vld [vmem:[%s169 + $0x38] sm:$0xff]
      %v185 = vld [vmem:[%s169 + $0x40] sm:$0xff]
      %v186 = vld [vmem:[%s169 + $0x48] sm:$0xff]
      %v187 = vld [vmem:[%s169 + $0x50] sm:$0xff]
      %v188 = vld [vmem:[%s169 + $0x58] sm:$0xff]
      %v189 = vld [vmem:[%s169 + $0x60] sm:$0xff]
      %v190 = vld [vmem:[%s169 + $0x68] sm:$0xff]
      %v191 = vld [vmem:[%s169 + $0x70] sm:$0xff]
      %v192 = vld [vmem:[%s169 + $0x78] sm:$0xff]
      %v193 = vld [vmem:[%s169 + $0x80] sm:$0xff]
      %v194 = vld [vmem:[%s169 + $0x88] sm:$0xff]
      %v195 = vld [vmem:[%s169 + $0x90] sm:$0xff]
      %v196 = vld [vmem:[%s169 + $0x98] sm:$0xff]
      %v197 = vld [vmem:[%s169 + $0xa0] sm:$0xff]
      %v198 = vld [vmem:[%s169 + $0xa8] sm:$0xff]
      %v199 = vld [vmem:[%s169 + $0xb0] sm:$0xff]
      %v200 = vld [vmem:[%s169 + $0xb8] sm:$0xff]
      %v201 = vld [vmem:[%s169 + $0xc0] sm:$0xff]
      %v202 = vld [vmem:[%s169 + $0xc8] sm:$0xff]
      %v203 = vld [vmem:[%s169 + $0xd0] sm:$0xff]
      %v204 = vld [vmem:[%s169 + $0xd8] sm:$0xff]
      %v205 = vld [vmem:[%s169 + $0xe0] sm:$0xff]
      %v206 = vld [vmem:[%s169 + $0xe8] sm:$0xff]
      %v207 = vld [vmem:[%s169 + $0xf0] sm:$0xff]
      %v208 = vld [vmem:[%s169 + $0xf8] sm:$0xff]
      %v209 = vld [vmem:[%s1] sm:$0xf]
      %v210 = vld [vmem:[%s1 + $0x4] sm:$0xf]
      %v211 = vld [vmem:[%s1 + $0x8] sm:$0xf]
      %v212 = vld [vmem:[%s1 + $0xc] sm:$0xf]
      %v213 = vld [vmem:[%s1 + $0x10] sm:$0xf]
      %v214 = vld [vmem:[%s1 + $0x14] sm:$0xf]
      %v215 = vld [vmem:[%s1 + $0x18] sm:$0xf]
      %v216 = vld [vmem:[%s1 + $0x1c] sm:$0xf]
      %v217 = vld [vmem:[%s1 + $0x20] sm:$0xf]
      %v218 = vld [vmem:[%s1 + $0x24] sm:$0xf]
      %v219 = vld [vmem:[%s1 + $0x28] sm:$0xf]
      %v220 = vld [vmem:[%s1 + $0x2c] sm:$0xf]
      %v221 = vld [vmem:[%s1 + $0x30] sm:$0xf]
      %v222 = vld [vmem:[%s1 + $0x34] sm:$0xf]
      %v223 = vld [vmem:[%s1 + $0x38] sm:$0xf]
      %v224 = vld [vmem:[%s1 + $0x3c] sm:$0xf]
      %v225 = vld [vmem:[%s1 + $0x40] sm:$0xf]
      %v226 = vld [vmem:[%s1 + $0x44] sm:$0xf]
      %v227 = vld [vmem:[%s1 + $0x48] sm:$0xf]
      %v228 = vld [vmem:[%s1 + $0x4c] sm:$0xf]
      %v229 = vld [vmem:[%s1 + $0x50] sm:$0xf]
      %v230 = vld [vmem:[%s1 + $0x54] sm:$0xf]
      %v231 = vld [vmem:[%s1 + $0x58] sm:$0xf]
      %v232 = vld [vmem:[%s1 + $0x5c] sm:$0xf]
      %v233 = vld [vmem:[%s1 + $0x60] sm:$0xf]
      %v234 = vld [vmem:[%s1 + $0x64] sm:$0xf]
      %v235 = vld [vmem:[%s1 + $0x68] sm:$0xf]
      %v236 = vld [vmem:[%s1 + $0x6c] sm:$0xf]
      %v237 = vld [vmem:[%s1 + $0x70] sm:$0xf]
      %v238 = vld [vmem:[%s1 + $0x74] sm:$0xf]
      %v239 = vld [vmem:[%s1 + $0x78] sm:$0xf]
      %v240 = vld [vmem:[%s1 + $0x7c] sm:$0xf]
      %v241 = vld [vmem:[%s2] sm:$0x1]
      %v243 = vperm.slane %v241, 0
      %v277 = vunpack.c.l.b16 %v177
      %v278 = vunpack.c.h.b16 %v177
      %v279 = vunpack.c.l.b16 %v178
      %v280 = vunpack.c.h.b16 %v178
      %v281 = vunpack.c.l.b16 %v179
      %v282 = vunpack.c.h.b16 %v179
      %v283 = vunpack.c.l.b16 %v180
      %v284 = vunpack.c.h.b16 %v180
      %v285 = vunpack.c.l.b16 %v181
      %v286 = vunpack.c.h.b16 %v181
      %v287 = vunpack.c.l.b16 %v182
      %v288 = vunpack.c.h.b16 %v182
      %v289 = vunpack.c.l.b16 %v183
      %v290 = vunpack.c.h.b16 %v183
      %v291 = vunpack.c.l.b16 %v184
      %v292 = vunpack.c.h.b16 %v184
      %v293 = vunpack.c.l.b16 %v185
      %v294 = vunpack.c.h.b16 %v185
      %v295 = vunpack.c.l.b16 %v186
      %v296 = vunpack.c.h.b16 %v186
      %v297 = vunpack.c.l.b16 %v187
      %v298 = vunpack.c.h.b16 %v187
      %v299 = vunpack.c.l.b16 %v188
      %v300 = vunpack.c.h.b16 %v188
      %v301 = vunpack.c.l.b16 %v189
      %v302 = vunpack.c.h.b16 %v189
      %v303 = vunpack.c.l.b16 %v190
      %v304 = vunpack.c.h.b16 %v190
      %v305 = vunpack.c.l.b16 %v191
      %v306 = vunpack.c.h.b16 %v191
      %v307 = vunpack.c.l.b16 %v192
      %v308 = vunpack.c.h.b16 %v192
      %v309 = vunpack.c.l.b16 %v193
      %v310 = vunpack.c.h.b16 %v193
      %v311 = vunpack.c.l.b16 %v194
      %v312 = vunpack.c.h.b16 %v194
      %v313 = vunpack.c.l.b16 %v195
      %v314 = vunpack.c.h.b16 %v195
      %v315 = vunpack.c.l.b16 %v196
      %v316 = vunpack.c.h.b16 %v196
      %v317 = vunpack.c.l.b16 %v197
      %v318 = vunpack.c.h.b16 %v197
      %v319 = vunpack.c.l.b16 %v198
      %v320 = vunpack.c.h.b16 %v198
      %v321 = vunpack.c.l.b16 %v199
      %v322 = vunpack.c.h.b16 %v199
      %v323 = vunpack.c.l.b16 %v200
      %v324 = vunpack.c.h.b16 %v200
      %v325 = vunpack.c.l.b16 %v201
      %v326 = vunpack.c.h.b16 %v201
      %v327 = vunpack.c.l.b16 %v202
      %v328 = vunpack.c.h.b16 %v202
      %v329 = vunpack.c.l.b16 %v203
      %v330 = vunpack.c.h.b16 %v203
      %v331 = vunpack.c.l.b16 %v204
      %v332 = vunpack.c.h.b16 %v204
      %v333 = vunpack.c.l.b16 %v205
      %v334 = vunpack.c.h.b16 %v205
      %v335 = vunpack.c.l.b16 %v206
      %v336 = vunpack.c.h.b16 %v206
      %v337 = vunpack.c.l.b16 %v207
      %v338 = vunpack.c.h.b16 %v207
      %v339 = vunpack.c.l.b16 %v208
      %v340 = vunpack.c.h.b16 %v208
      %v341 = vpack.c.b16 %v279, %v277
      %v342 = vpack.c.b16 %v280, %v278
      %v343 = vpack.c.b16 %v283, %v281
      %v344 = vpack.c.b16 %v284, %v282
      %v345 = vpack.c.b16 %v287, %v285
      %v346 = vpack.c.b16 %v288, %v286
      %v347 = vpack.c.b16 %v291, %v289
      %v348 = vpack.c.b16 %v292, %v290
      %v349 = vpack.c.b16 %v295, %v293
      %v350 = vpack.c.b16 %v296, %v294
      %v351 = vpack.c.b16 %v299, %v297
      %v352 = vpack.c.b16 %v300, %v298
      %v353 = vpack.c.b16 %v303, %v301
      %v354 = vpack.c.b16 %v304, %v302
      %v355 = vpack.c.b16 %v307, %v305
      %v356 = vpack.c.b16 %v308, %v306
      %v357 = vpack.c.b16 %v311, %v309
      %v358 = vpack.c.b16 %v312, %v310
      %v359 = vpack.c.b16 %v315, %v313
      %v360 = vpack.c.b16 %v316, %v314
      %v361 = vpack.c.b16 %v319, %v317
      %v362 = vpack.c.b16 %v320, %v318
      %v363 = vpack.c.b16 %v323, %v321
      %v364 = vpack.c.b16 %v324, %v322
      %v365 = vpack.c.b16 %v327, %v325
      %v366 = vpack.c.b16 %v328, %v326
      %v367 = vpack.c.b16 %v331, %v329
      %v368 = vpack.c.b16 %v332, %v330
      %v369 = vpack.c.b16 %v335, %v333
      %v370 = vpack.c.b16 %v336, %v334
      %v371 = vpack.c.b16 %v339, %v337
      %v372 = vpack.c.b16 %v340, %v338
      %v437 = vunpack.c.l.b16 %v209
      %v438 = vunpack.c.l.b16 %v210
      %v439 = vunpack.c.l.b16 %v211
      %v440 = vunpack.c.l.b16 %v212
      %v441 = vunpack.c.l.b16 %v213
      %v442 = vunpack.c.l.b16 %v214
      %v443 = vunpack.c.l.b16 %v215
      %v444 = vunpack.c.l.b16 %v216
      %v445 = vunpack.c.l.b16 %v217
      %v446 = vunpack.c.l.b16 %v218
      %v447 = vunpack.c.l.b16 %v219
      %v448 = vunpack.c.l.b16 %v220
      %v449 = vunpack.c.l.b16 %v221
      %v450 = vunpack.c.l.b16 %v222
      %v451 = vunpack.c.l.b16 %v223
      %v452 = vunpack.c.l.b16 %v224
      %v453 = vunpack.c.l.b16 %v225
      %v454 = vunpack.c.l.b16 %v226
      %v455 = vunpack.c.l.b16 %v227
      %v456 = vunpack.c.l.b16 %v228
      %v457 = vunpack.c.l.b16 %v229
      %v458 = vunpack.c.l.b16 %v230
      %v459 = vunpack.c.l.b16 %v231
      %v460 = vunpack.c.l.b16 %v232
      %v461 = vunpack.c.l.b16 %v233
      %v462 = vunpack.c.l.b16 %v234
      %v463 = vunpack.c.l.b16 %v235
      %v464 = vunpack.c.l.b16 %v236
      %v465 = vunpack.c.l.b16 %v237
      %v466 = vunpack.c.l.b16 %v238
      %v467 = vunpack.c.l.b16 %v239
      %v468 = vunpack.c.l.b16 %v240
      %v469 = vpack.c.b16 %v438, %v437
      %v470 = vpack.c.b16 %v440, %v439
      %v471 = vpack.c.b16 %v442, %v441
      %v472 = vpack.c.b16 %v444, %v443
      %v473 = vpack.c.b16 %v446, %v445
      %v474 = vpack.c.b16 %v448, %v447
      %v475 = vpack.c.b16 %v450, %v449
      %v476 = vpack.c.b16 %v452, %v451
      %v477 = vpack.c.b16 %v454, %v453
      %v478 = vpack.c.b16 %v456, %v455
      %v479 = vpack.c.b16 %v458, %v457
      %v480 = vpack.c.b16 %v460, %v459
      %v481 = vpack.c.b16 %v462, %v461
      %v482 = vpack.c.b16 %v464, %v463
      %v483 = vpack.c.b16 %v466, %v465
      %v484 = vpack.c.b16 %v468, %v467
      %501 = vmatpush.bf16.msra.mxu0 %v476
      %502 = vmatpush.bf16.msra.mxu0 %v475
      %503 = vmatpush.bf16.msra.mxu0 %v474
      %504 = vmatpush.bf16.msra.mxu0 %v473
      %505 = vmatpush.bf16.msra.mxu0 %v472
      %506 = vmatpush.bf16.msra.mxu0 %v471
      %507 = vmatpush.bf16.msra.mxu0 %v470
      %508 = vmatpush.bf16.msra.mxu0 %v469
      %509 = vmatmul.bf16.gmra.mxu0 %v341
      %v510 = vpop.f32.mrf.mxu0
      %v511 = vadd.f32 %v243, %v510
      %v512 = vpop.f32.mrf.mxu0
      %v513 = vadd.f32 %v243, %v512
      %514 = vmatmul.bf16.gmra.mxu0 %v343
      %v515 = vpop.f32.mrf.mxu0
      %v516 = vadd.f32 %v243, %v515
      %v517 = vpop.f32.mrf.mxu0
      %v518 = vadd.f32 %v243, %v517
      %519 = vmatmul.bf16.gmra.mxu0 %v345
      %v520 = vpop.f32.mrf.mxu0
      %v521 = vadd.f32 %v243, %v520
      %v522 = vpop.f32.mrf.mxu0
      %v523 = vadd.f32 %v243, %v522
      %524 = vmatmul.bf16.gmra.mxu0 %v347
      %v525 = vpop.f32.mrf.mxu0
      %v526 = vadd.f32 %v243, %v525
      %v527 = vpop.f32.mrf.mxu0
      %v528 = vadd.f32 %v243, %v527
      %529 = vmatmul.bf16.gmra.mxu0 %v349
      %v530 = vpop.f32.mrf.mxu0
      %v531 = vadd.f32 %v243, %v530
      %v532 = vpop.f32.mrf.mxu0
      %v533 = vadd.f32 %v243, %v532
      %534 = vmatmul.bf16.gmra.mxu0 %v351
      %v535 = vpop.f32.mrf.mxu0
      %v536 = vadd.f32 %v243, %v535
      %v537 = vpop.f32.mrf.mxu0
      %v538 = vadd.f32 %v243, %v537
      %539 = vmatmul.bf16.gmra.mxu0 %v353
      %v540 = vpop.f32.mrf.mxu0
      %v541 = vadd.f32 %v243, %v540
      %v542 = vpop.f32.mrf.mxu0
      %v543 = vadd.f32 %v243, %v542
      %544 = vmatmul.bf16.gmra.mxu0 %v355
      %v545 = vpop.f32.mrf.mxu0
      %v546 = vadd.f32 %v243, %v545
      %v547 = vpop.f32.mrf.mxu0
      %v548 = vadd.f32 %v243, %v547
      %549 = vmatmul.bf16.gmra.mxu0 %v357
      %v550 = vpop.f32.mrf.mxu0
      %v551 = vadd.f32 %v243, %v550
      %v552 = vpop.f32.mrf.mxu0
      %v553 = vadd.f32 %v243, %v552
      %554 = vmatmul.bf16.gmra.mxu0 %v359
      %v555 = vpop.f32.mrf.mxu0
      %v556 = vadd.f32 %v243, %v555
      %v557 = vpop.f32.mrf.mxu0
      %v558 = vadd.f32 %v243, %v557
      %559 = vmatmul.bf16.gmra.mxu0 %v361
      %v560 = vpop.f32.mrf.mxu0
      %v561 = vadd.f32 %v243, %v560
      %v562 = vpop.f32.mrf.mxu0
      %v563 = vadd.f32 %v243, %v562
      %564 = vmatmul.bf16.gmra.mxu0 %v363
      %v565 = vpop.f32.mrf.mxu0
      %v566 = vadd.f32 %v243, %v565
      %v567 = vpop.f32.mrf.mxu0
      %v568 = vadd.f32 %v243, %v567
      %569 = vmatmul.bf16.gmra.mxu0 %v365
      %v570 = vpop.f32.mrf.mxu0
      %v571 = vadd.f32 %v243, %v570
      %v572 = vpop.f32.mrf.mxu0
      %v573 = vadd.f32 %v243, %v572
      %574 = vmatmul.bf16.gmra.mxu0 %v367
      %v575 = vpop.f32.mrf.mxu0
      %v576 = vadd.f32 %v243, %v575
      %v577 = vpop.f32.mrf.mxu0
      %v578 = vadd.f32 %v243, %v577
      %579 = vmatmul.bf16.gmra.mxu0 %v369
      %v580 = vpop.f32.mrf.mxu0
      %v581 = vadd.f32 %v243, %v580
      %v582 = vpop.f32.mrf.mxu0
      %v583 = vadd.f32 %v243, %v582
      %584 = vmatmul.bf16.gmra.mxu0 %v371
      %v585 = vpop.f32.mrf.mxu0
      %v586 = vadd.f32 %v243, %v585
      %v587 = vpop.f32.mrf.mxu0
      %v588 = vadd.f32 %v243, %v587
      %589 = vdwg.mxu0
      %590 = vmatpush.bf16.msra.mxu0 %v484
      %591 = vmatpush.bf16.msra.mxu0 %v483
      %592 = vmatpush.bf16.msra.mxu0 %v482
      %593 = vmatpush.bf16.msra.mxu0 %v481
      %594 = vmatpush.bf16.msra.mxu0 %v480
      %595 = vmatpush.bf16.msra.mxu0 %v479
      %596 = vmatpush.bf16.msra.mxu0 %v478
      %597 = vmatpush.bf16.msra.mxu0 %v477
      %598 = vmatmul.bf16.gmra.mxu0 %v342
      %v599 = vpop.f32.mrf.mxu0
      %v600 = vadd.f32 %v511, %v599
      %v601 = vpop.f32.mrf.mxu0
      %v602 = vadd.f32 %v513, %v601
      %603 = vmatmul.bf16.gmra.mxu0 %v344
      %v604 = vpop.f32.mrf.mxu0
      %v605 = vadd.f32 %v516, %v604
      %v606 = vpop.f32.mrf.mxu0
      %v607 = vadd.f32 %v518, %v606
      %608 = vmatmul.bf16.gmra.mxu0 %v346
      %v609 = vpop.f32.mrf.mxu0
      %v610 = vadd.f32 %v521, %v609
      %v611 = vpop.f32.mrf.mxu0
      %v612 = vadd.f32 %v523, %v611
      %613 = vmatmul.bf16.gmra.mxu0 %v348
      %v614 = vpop.f32.mrf.mxu0
      %v615 = vadd.f32 %v526, %v614
      %v616 = vpop.f32.mrf.mxu0
      %v617 = vadd.f32 %v528, %v616
      %618 = vmatmul.bf16.gmra.mxu0 %v350
      %v619 = vpop.f32.mrf.mxu0
      %v620 = vadd.f32 %v531, %v619
      %v621 = vpop.f32.mrf.mxu0
      %v622 = vadd.f32 %v533, %v621
      %623 = vmatmul.bf16.gmra.mxu0 %v352
      %v624 = vpop.f32.mrf.mxu0
      %v625 = vadd.f32 %v536, %v624
      %v626 = vpop.f32.mrf.mxu0
      %v627 = vadd.f32 %v538, %v626
      %628 = vmatmul.bf16.gmra.mxu0 %v354
      %v629 = vpop.f32.mrf.mxu0
      %v630 = vadd.f32 %v541, %v629
      %v631 = vpop.f32.mrf.mxu0
      %v632 = vadd.f32 %v543, %v631
      %633 = vmatmul.bf16.gmra.mxu0 %v356
      %v634 = vpop.f32.mrf.mxu0
      %v635 = vadd.f32 %v546, %v634
      %v636 = vpop.f32.mrf.mxu0
      %v637 = vadd.f32 %v548, %v636
      %638 = vmatmul.bf16.gmra.mxu0 %v358
      %v639 = vpop.f32.mrf.mxu0
      %v640 = vadd.f32 %v551, %v639
      %v641 = vpop.f32.mrf.mxu0
      %v642 = vadd.f32 %v553, %v641
      %643 = vmatmul.bf16.gmra.mxu0 %v360
      %v644 = vpop.f32.mrf.mxu0
      %v645 = vadd.f32 %v556, %v644
      %v646 = vpop.f32.mrf.mxu0
      %v647 = vadd.f32 %v558, %v646
      %648 = vmatmul.bf16.gmra.mxu0 %v362
      %v649 = vpop.f32.mrf.mxu0
      %v650 = vadd.f32 %v561, %v649
      %v651 = vpop.f32.mrf.mxu0
      %v652 = vadd.f32 %v563, %v651
      %653 = vmatmul.bf16.gmra.mxu0 %v364
      %v654 = vpop.f32.mrf.mxu0
      %v655 = vadd.f32 %v566, %v654
      %v656 = vpop.f32.mrf.mxu0
      %v657 = vadd.f32 %v568, %v656
      %658 = vmatmul.bf16.gmra.mxu0 %v366
      %v659 = vpop.f32.mrf.mxu0
      %v660 = vadd.f32 %v571, %v659
      %v661 = vpop.f32.mrf.mxu0
      %v662 = vadd.f32 %v573, %v661
      %663 = vmatmul.bf16.gmra.mxu0 %v368
      %v664 = vpop.f32.mrf.mxu0
      %v665 = vadd.f32 %v576, %v664
      %v666 = vpop.f32.mrf.mxu0
      %v667 = vadd.f32 %v578, %v666
      %668 = vmatmul.bf16.gmra.mxu0 %v370
      %v669 = vpop.f32.mrf.mxu0
      %v670 = vadd.f32 %v581, %v669
      %v671 = vpop.f32.mrf.mxu0
      %v672 = vadd.f32 %v583, %v671
      %673 = vmatmul.bf16.gmra.mxu0 %v372
      %v674 = vpop.f32.mrf.mxu0
      %v675 = vadd.f32 %v586, %v674
      %v676 = vpop.f32.mrf.mxu0
      %v677 = vadd.f32 %v588, %v676
      %678 = vdwg.mxu0
      %679 = vst [vmem:[%s175] sm:$0xff] %v600
      %680 = vst [vmem:[%s175 + $0x8] sm:$0xff] %v602
      %681 = vst [vmem:[%s175 + $0x10] sm:$0xff] %v605
      %682 = vst [vmem:[%s175 + $0x18] sm:$0xff] %v607
      %683 = vst [vmem:[%s175 + $0x20] sm:$0xff] %v610
      %684 = vst [vmem:[%s175 + $0x28] sm:$0xff] %v612
      %685 = vst [vmem:[%s175 + $0x30] sm:$0xff] %v615
      %686 = vst [vmem:[%s175 + $0x38] sm:$0xff] %v617
      %687 = vst [vmem:[%s175 + $0x40] sm:$0xff] %v620
      %688 = vst [vmem:[%s175 + $0x48] sm:$0xff] %v622
      %689 = vst [vmem:[%s175 + $0x50] sm:$0xff] %v625
      %690 = vst [vmem:[%s175 + $0x58] sm:$0xff] %v627
      %691 = vst [vmem:[%s175 + $0x60] sm:$0xff] %v630
      %692 = vst [vmem:[%s175 + $0x68] sm:$0xff] %v632
      %693 = vst [vmem:[%s175 + $0x70] sm:$0xff] %v635
      %694 = vst [vmem:[%s175 + $0x78] sm:$0xff] %v637
      %695 = vst [vmem:[%s175 + $0x80] sm:$0xff] %v640
      %696 = vst [vmem:[%s175 + $0x88] sm:$0xff] %v642
      %697 = vst [vmem:[%s175 + $0x90] sm:$0xff] %v645
      %698 = vst [vmem:[%s175 + $0x98] sm:$0xff] %v647
      %699 = vst [vmem:[%s175 + $0xa0] sm:$0xff] %v650
      %700 = vst [vmem:[%s175 + $0xa8] sm:$0xff] %v652
      %701 = vst [vmem:[%s175 + $0xb0] sm:$0xff] %v655
      %702 = vst [vmem:[%s175 + $0xb8] sm:$0xff] %v657
      %703 = vst [vmem:[%s175 + $0xc0] sm:$0xff] %v660
      %704 = vst [vmem:[%s175 + $0xc8] sm:$0xff] %v662
      %705 = vst [vmem:[%s175 + $0xd0] sm:$0xff] %v665
      %706 = vst [vmem:[%s175 + $0xd8] sm:$0xff] %v667
      %707 = vst [vmem:[%s175 + $0xe0] sm:$0xff] %v670
      %708 = vst [vmem:[%s175 + $0xe8] sm:$0xff] %v672
      %709 = vst [vmem:[%s175 + $0xf0] sm:$0xff] %v675
      %710 = vst [vmem:[%s175 + $0xf8] sm:$0xff] %v677
      %s711 = smul.u32 32, %s14
      %p712 = scmp.lt.s32.totalorder %s711, 63
      %s713 = scalar_select %p712, %s711, 63
      %s714 = smul.addr %s713, 8
      %s715 = scalar_lea.vmem %s3, %s714
      // Predicated region
      $region33: #{linear_block.1} parent=31 // pred_check
        %p716 = pneg %p100
      $region34: #{linear_block.1} parent=31 // pred_check_branch
        %718 = sbr.rel (%p716) target = $region36
      $region35: #{linear_block.1} parent=31 // pred_region
        %s719 = smul.u32 32, %s14
      $region36: #{linear_block.1} parent=31 // pred_fallthru
        _
    $region32: #{linear_block.1} parent=5 // pred_fallthru
      _
    %p720 = scmp.le.s32.totalorder 2, %s9
    // Predicated region
    $region37: #{linear_block.1} parent=5 // pred_check
      %p721 = pneg %p720
    $region38: #{linear_block.1} parent=5 // pred_check_branch
      %723 = sbr.rel (%p721) target = $region40
    $region39: #{linear_block.1} parent=5 // pred_region
      %s724 = ssub.s32 %s9, 2
      // Predicated region
      $region41: #{linear_block.1} parent=39 // pred_check
        %p725 = pneg %p106
      $region42: #{linear_block.1} parent=39 // pred_check_branch
        %727 = sbr.rel (%p725) target = $region44
      $region43: #{linear_block.1} parent=39 // pred_region
        %s728 = smul.u32 32, %s15
        %p729 = scmp.lt.s32.totalorder %s728, 63
        %s730 = scalar_select %p729, %s728, 63
        %s731 = smul.addr %s730, 8
        %s732 = scalar_lea.vmem %s3, %s731
      $region44: #{linear_block.1} parent=39 // pred_fallthru
        _
    $region40: #{linear_block.1} parent=5 // pred_fallthru
      _
  $region6: #{linear_block.1} parent=0 // loop_footer
    %s13 = sadd.s32 1, %s9
  $region7: #{linear_block.1} parent=0 // loop_footer_branch
    %8 = sbr.rel target = $region3
  $region8: #{linear_block.1} parent=0 // loop_exit
    _

</llo_original>
